<compile_context>
chip_gen: v6e
topology: v6e:2x2x1
jax: 0.10.0
libtpu: 0.0.40
codegen_flags: <defaults>
</compile_context>

<pallas_src>
import math

import numpy as np
import jax
import jax.numpy as jnp
from jax.experimental import pallas as pl
from jax.experimental.pallas import tpu as pltpu

K = 3  # Linear in_features, fixed by the module: nn.Linear(3, 1)


def _scalar_input_kernel(x_ref, p_ref, o_ref):
    """Fused Linear(3 -> 1) + PReLU on one dense (TS, L) tile.

    x_ref: (3, TS, L) f32 VMEM -- feature k is a dense (TS, L) slab
    p_ref: (5,)       f32 SMEM -- [w0, w1, w2, bias, prelu_alpha]
    o_ref: (TS, L)    f32 VMEM -- dense output tile (unmasked stores)
    """
    # Three explicit slab FMAs; scalar operands splat from SMEM for free.
    y = (x_ref[0] * p_ref[0]
         + x_ref[1] * p_ref[1]
         + x_ref[2] * p_ref[2]
         + p_ref[3])
    alpha = p_ref[4]
    o_ref[...] = jnp.where(y >= 0.0, y, alpha * y)


def _pick_tiles(M):
    """Pick lane width L (multiple of 128) and row tile TS (multiple of 8)."""
    if M >= (1 << 20):
        L = 512
    elif M >= (1 << 14):
        L = 256
    else:
        L = 128
    rows = -(-M // L)                      # rows of L lanes needed
    rows8 = ((rows + 7) // 8) * 8
    # ~64K output elements per grid step (~1 MB f32 traffic in+out) amortizes
    # the per-step overhead; never exceed the (padded) problem size.
    TS = min(max(8, (65536 // L // 8) * 8), rows8)
    return L, TS


@jax.jit
def scalar_input_forward(x, params):
    """out = PReLU(Linear(3, 1)(x)) applied to the last dim of x.

    x:      (..., 3) float tensor (module docstring: (N, C, H, W) with W == 3)
    params: {"linear_w": (1, 3), "linear_b": (1,), "prelu_alpha": (1,)}
    returns (..., 1) float32
    """
    assert x.shape[-1] == K, f"expected last dim {K}, got {x.shape[-1]}"
    lead = x.shape[:-1]
    M = math.prod(lead)

    L, TS = _pick_tiles(M)
    rows_padded = ((-(-M // L) + TS - 1) // TS) * TS
    Mp = rows_padded * L

    # Dense working layout: features -> leading axis, flattened positions ->
    # (rows, lanes).  Under jit this is a single fused copy pass.
    xt = jnp.transpose(x.reshape(M, K).astype(jnp.float32), (1, 0))   # (K, M)
    if Mp != M:
        xt = jnp.pad(xt, ((0, 0), (0, Mp - M)))    # zero tail, sliced off below
    xt = xt.reshape(K, rows_padded, L)

    p = jnp.concatenate([
        params["linear_w"].reshape(K).astype(jnp.float32),
        params["linear_b"].reshape(1).astype(jnp.float32),
        params["prelu_alpha"].reshape(1).astype(jnp.float32),
    ])                                             # (5,) -> SMEM scalars

    out = pl.pallas_call(
        _scalar_input_kernel,
        out_shape=jax.ShapeDtypeStruct((rows_padded, L), jnp.float32),
        grid=(rows_padded // TS,),
        in_specs=[
            pl.BlockSpec((K, TS, L), lambda i: (0, i, 0)),        # streamed tiles
            pl.BlockSpec(memory_space=pltpu.MemorySpace.SMEM),    # 5 scalar params
        ],
        out_specs=pl.BlockSpec((TS, L), lambda i: (i, 0)),        # dense stores
        compiler_params=pltpu.CompilerParams(
            dimension_semantics=("parallel",)),                   # v7x megacore
    )(xt, p)

    return out.reshape(Mp)[:M].reshape(lead + (1,))


if __name__ == "__main__":
    key = jax.random.PRNGKey(0)
    ks = jax.random.split(key, 3)

    # Input per the module docstring: (N, C, H, W) with W = 3 (Linear in_features).
    N, C, H = 2, 4, 20
    x = jax.random.normal(ks[0], (N, C, H, K), jnp.float32)

    params = {
        "linear_w": 0.5 * jax.random.normal(ks[1], (1, K), jnp.float32),
        "linear_b": 0.1 * jax.random.normal(ks[2], (1,), jnp.float32),
        "prelu_alpha": jnp.asarray([0.25], jnp.float32),   # nn.PReLU() default init
    }

    out = jax.block_until_ready(scalar_input_forward(x, params))
    assert out.shape == (N, C, H, 1), out.shape

    # Pure-JAX reference: Linear(3, 1) then PReLU.
    y_ref = jnp.einsum("nchk,ok->ncho", x, params["linear_w"]) + params["linear_b"]
    a = params["prelu_alpha"][0]
    y_ref = jnp.where(y_ref >= 0, y_ref, a * y_ref)

    np.testing.assert_allclose(np.asarray(out), np.asarray(y_ref),
                               rtol=1e-5, atol=1e-5)
    print("KERNEL_OK")
</pallas_src>

<mosaic_0001>
module attributes {stable_mosaic.version = 11 : i64} {
  func.func @_scalar_input_kernel(%arg0: i32, %arg1: memref<3x8x128xf32, #tpu.memory_space<vmem>>, %arg2: memref<5xf32, #tpu.memory_space<smem>>, %arg3: memref<8x128xf32, #tpu.memory_space<vmem>>) attributes {dimension_semantics = [#tpu.dimension_semantics<parallel>], iteration_bounds = array<i64: 1>, scalar_prefetch = 0 : i64, scratch_operands = 0 : i64, tpu.core_type = #tpu.core_type<tc>, window_params = [{transform_indices = @transform_0, window_bounds = array<i64: 3, 8, 128>}, {transform_indices = @transform_1, window_bounds = array<i64: 5>}, {transform_indices = @transform_2, window_bounds = array<i64: 8, 128>}]} {
    %c0 = arith.constant 0 : index
    %c0_0 = arith.constant 0 : index
    %c0_1 = arith.constant 0 : index
    %0 = vector.load %arg1[%c0, %c0_0, %c0_1] : memref<3x8x128xf32, #tpu.memory_space<vmem>>, vector<1x8x128xf32>
    %1 = vector.shape_cast %0 : vector<1x8x128xf32> to vector<8x128xf32>
    %c0_2 = arith.constant 0 : index
    %2 = memref.load %arg2[%c0_2] : memref<5xf32, #tpu.memory_space<smem>>
    %3 = vector.broadcast %2 : f32 to vector<8x128xf32>
    %4 = arith.mulf %1, %3 : vector<8x128xf32>
    %c1 = arith.constant 1 : index
    %c0_3 = arith.constant 0 : index
    %c0_4 = arith.constant 0 : index
    %5 = vector.load %arg1[%c1, %c0_3, %c0_4] : memref<3x8x128xf32, #tpu.memory_space<vmem>>, vector<1x8x128xf32>
    %6 = vector.shape_cast %5 : vector<1x8x128xf32> to vector<8x128xf32>
    %c1_5 = arith.constant 1 : index
    %7 = memref.load %arg2[%c1_5] : memref<5xf32, #tpu.memory_space<smem>>
    %8 = vector.broadcast %7 : f32 to vector<8x128xf32>
    %9 = arith.mulf %6, %8 : vector<8x128xf32>
    %10 = arith.addf %4, %9 : vector<8x128xf32>
    %c2 = arith.constant 2 : index
    %c0_6 = arith.constant 0 : index
    %c0_7 = arith.constant 0 : index
    %11 = vector.load %arg1[%c2, %c0_6, %c0_7] : memref<3x8x128xf32, #tpu.memory_space<vmem>>, vector<1x8x128xf32>
    %12 = vector.shape_cast %11 : vector<1x8x128xf32> to vector<8x128xf32>
    %c2_8 = arith.constant 2 : index
    %13 = memref.load %arg2[%c2_8] : memref<5xf32, #tpu.memory_space<smem>>
    %14 = vector.broadcast %13 : f32 to vector<8x128xf32>
    %15 = arith.mulf %12, %14 : vector<8x128xf32>
    %16 = arith.addf %10, %15 : vector<8x128xf32>
    %c3 = arith.constant 3 : index
    %17 = memref.load %arg2[%c3] : memref<5xf32, #tpu.memory_space<smem>>
    %18 = vector.broadcast %17 : f32 to vector<8x128xf32>
    %19 = arith.addf %16, %18 : vector<8x128xf32>
    %c4 = arith.constant 4 : index
    %20 = memref.load %arg2[%c4] : memref<5xf32, #tpu.memory_space<smem>>
    %cst = arith.constant 0.000000e+00 : f32
    %21 = vector.broadcast %cst : f32 to vector<8x128xf32>
    %22 = arith.cmpf oge, %19, %21 : vector<8x128xf32>
    %23 = vector.broadcast %20 : f32 to vector<8x128xf32>
    %24 = arith.mulf %23, %19 : vector<8x128xf32>
    %25 = arith.select %22, %19, %24 : vector<8x128xi1>, vector<8x128xf32>
    %c0_9 = arith.constant 0 : index
    %c0_10 = arith.constant 0 : index
    %26 = vector.load %arg3[%c0_9, %c0_10] : memref<8x128xf32, #tpu.memory_space<vmem>>, vector<8x128xf32>
    tpu.vector_store %arg3[%c0_9, %c0_10], %25 {strides = array<i32>} : memref<8x128xf32, #tpu.memory_space<vmem>>, vector<8x128xf32>,
    return
  }
  func.func @transform_0(%arg0: i32) -> (i32, i32, i32) {
    %c0_i32 = arith.constant 0 : i32
    %c0_i32_0 = arith.constant 0 : i32
    %c0_i32_1 = arith.constant 0 : i32
    return %c0_i32, %arg0, %c0_i32_0 : i32, i32, i32
  }
  func.func @transform_1(%arg0: i32) -> i32 {
    %c0_i32 = arith.constant 0 : i32
    %c0_i32_0 = arith.constant 0 : i32
    return %c0_i32 : i32
  }
  func.func @transform_2(%arg0: i32) -> (i32, i32) {
    %c0_i32 = arith.constant 0 : i32
    %c0_i32_0 = arith.constant 0 : i32
    return %arg0, %c0_i32 : i32, i32
  }
}

</mosaic_0001>

<llo_original>
// kernel: scalar_input_forward.1
$region0: #{scalar_input_forward.1}
  #allocation0 [shape = 'u32[]', space=smem, size = 0x4, offset = 0x4, fixed_abs, tag = 'smem constant byte address 0x4 - core index']
  #allocation1 [shape = 'u32[144,128]{1,0:T(1,128)}', space=vmem, size = 0x12000, scoped, tag = 'internal scratch']
  %s0 = inlined_call_operand.vmem [shape: f32[3,8,128], index: 0, kind: input, shape index: {}]
  %s1 = inlined_call_operand.vmem [shape: f32[5], index: 1, kind: input, shape index: {}]
  %s2 = inlined_call_operand.vmem [shape: f32[8,128], index: 2, kind: output, shape index: {}]
  %s3 = sld [smem:[#allocation0]]
  $region22: #{scalar_input_forward.1} parent=0
    _
  %s5 = ssub.s32 1, %s3
  %s6 = scalar_select 0, %s5, %s3
  $region1: #{scalar_input_forward.1} parent=0
    #allocation2 [shape = 'u8[512]{0}', space=smem, size = 0x200, scoped, tag = 'input window, operand 1, single buffered']
    #allocation3 [shape = 's32[1]{0}', space=sflag, size = 0x4, scoped, tag = 'scoped memory for scalar_input_forward.1']
    %7 = vsyncpa [#allocation3], 0
    // Predicated region
    $region2: #{scalar_input_forward.1} parent=1 // pred_check
      _
    $region3: #{scalar_input_forward.1} parent=1 // pred_check_branch
      %9 = sbr.rel (0) target = $region5
    $region4: #{scalar_input_forward.1} parent=1 // pred_region
      _
    $region5: #{scalar_input_forward.1} parent=1 // pred_fallthru
      _
    // Predicated region
    $region6: #{scalar_input_forward.1} parent=1 // pred_check
      _
    $region7: #{scalar_input_forward.1} parent=1 // pred_check_branch
      %11 = sbr.rel (0) target = $region9
    $region8: #{scalar_input_forward.1} parent=1 // pred_region
      %s13 = ssub.s32 16, 16
      %14 = vsyncadd [#allocation3], %s13
      %s16 = sshll.u32 %s1, 4
      %s17 = int_to_ptr.vmem [resolvable:$true] %s16
      %19 = dma.vmem_to_smem %s17, 16, [#allocation2], [#allocation3]
    $region9: #{scalar_input_forward.1} parent=1 // pred_fallthru
      _
    // Predicated region
    $region10: #{scalar_input_forward.1} parent=1 // pred_check
      _
    $region11: #{scalar_input_forward.1} parent=1 // pred_check_branch
      %21 = sbr.rel (0) target = $region13
    $region12: #{scalar_input_forward.1} parent=1 // pred_region
      %22 = dma.done [#allocation3], 16
    $region13: #{scalar_input_forward.1} parent=1 // pred_fallthru
      _
    %23 = sfence
    %v24 = vld [vmem:[%s0] sm:$0xff]
    %s25 = sld [smem:[#allocation2]]
    %v26 = vstv %s25
    %v27 = vmul.f32 %v24, %v26
    %s28 = scalar_lea.vmem %s0, 8
    %v29 = vld [vmem:[%s28] sm:$0xff]
    %s30 = sld [smem:[#allocation2 + $0x1]]
    %v31 = vstv %s30
    %v32 = vmul.f32 %v29, %v31
    %v33 = vadd.f32 %v27, %v32
    %s34 = scalar_lea.vmem %s0, 16
    %v35 = vld [vmem:[%s34] sm:$0xff]
    %s36 = sld [smem:[#allocation2 + $0x2]]
    %v37 = vstv %s36
    %v38 = vmul.f32 %v35, %v37
    %v39 = vadd.f32 %v33, %v38
    %s40 = sld [smem:[#allocation2 + $0x3]]
    %v41 = vstv %s40
    %v42 = vadd.f32 %v39, %v41
    %s43 = sld [smem:[#allocation2 + $0x4]]
    %vm44 = vcmp.ge.f32.partialorder %v42, 0.0
    %v45 = vstv %s43
    %v46 = vmul.f32 %v45, %v42
    %v47 = vsel %vm44, %v42, %v46
    %48 = vst [vmem:[%s2] sm:$0xff] %v47
    // Predicated region
    $region14: #{scalar_input_forward.1} parent=1 // pred_check
      _
    $region15: #{scalar_input_forward.1} parent=1 // pred_check_branch
      %50 = sbr.rel (0) target = $region17
    $region16: #{scalar_input_forward.1} parent=1 // pred_region
      _
    $region17: #{scalar_input_forward.1} parent=1 // pred_fallthru
      _
    // Predicated region
    $region18: #{scalar_input_forward.1} parent=1 // pred_check
      _
    $region19: #{scalar_input_forward.1} parent=1 // pred_check_branch
      %52 = sbr.rel (0) target = $region21
    $region20: #{scalar_input_forward.1} parent=1 // pred_region
      _
    $region21: #{scalar_input_forward.1} parent=1 // pred_fallthru
      _
    %53 = vsyncpa [#allocation3], 1

</llo_original>
